<compile_context>
chip_gen: v7x
topology: tpu7x:2x2x1
jax: 0.10.0
libtpu: 0.0.40
codegen_flags: <defaults>
</compile_context>

<pallas_src>
import functools

import jax
import jax.numpy as jnp
from jax.experimental import pallas as pl
from jax.experimental.pallas import tpu as pltpu

LANE = 128
BF16_SUBLANE = 16  # bf16 packs 16 rows per vreg sublane group


def _round_up(x, m):
    return ((x + m - 1) // m) * m


def _device_kind():
    devs = jax.devices()
    if not devs:
        return ""
    return (getattr(devs[0], "device_kind", "") or "").lower()


def _num_tensorcores():
    # v7x has 2 TensorCores per chip; v5e/v6e have 1.
    return 2 if "v7" in _device_kind() else 1


def _has_bf16_eup():
    # v5 generation has no bf16 EUP/VPU; v6e/v7x do.
    return "v5" not in _device_kind()


def _head_kernel(x_ref, w1_ref, b1_ref, w2_ref, b2_ref, o_ref, *, tanh_in_bf16):
    # x_ref:  (tb, Hp)  bf16 feature tile, streamed over the batch axis
    # w1_ref: (Hp, Hp)  bf16 dense weight, (in, out) layout (resident)
    # b1_ref: (1, Hp)   f32  dense bias
    # w2_ref: (Hp, Lp)  bf16 out_proj weight, (in, out) layout, lane-padded
    # b2_ref: (1, Lp)   f32  out_proj bias, lane-padded
    # o_ref:  (tb, Lp)  logits (lane-dense)
    h = jnp.dot(x_ref[...], w1_ref[...],
                preferred_element_type=jnp.float32) + b1_ref[...]
    if tanh_in_bf16:
        # v6e/v7x: bf16 tanh halves EUP occupancy; downcast needed for the
        # bf16 second matmul anyway.
        h_act = jnp.tanh(h.astype(jnp.bfloat16))
    else:
        # v5e: no bf16 EUP -> tanh in f32, then downcast for the bf16 dot.
        h_act = jnp.tanh(h).astype(jnp.bfloat16)
    # Native bf16 x bf16 MXU dot, f32 accumulation.
    logits = jnp.dot(h_act, w2_ref[...],
                     preferred_element_type=jnp.float32) + b2_ref[...]
    o_ref[...] = logits.astype(o_ref.dtype)


def wav2vec2_classification_head(features, w_dense, b_dense, w_out, b_out,
                                 *, batch_tile=None,
                                 compute_dtype=jnp.bfloat16,
                                 tanh_in_bf16=None):
    """features: (B, H). Weights pre-transposed to (in, out). Returns (B, num_labels)."""
    B, H = features.shape
    L = w_out.shape[-1]
    out_dtype = features.dtype

    if tanh_in_bf16 is None:
        tanh_in_bf16 = _has_bf16_eup()

    # Lane-pad hidden and num_labels so every matmul K/N dim and the output
    # store are lane-dense (zero padding is exact for Linear->tanh->Linear).
    Hp = max(LANE, _round_up(H, LANE))
    Lp = max(LANE, _round_up(L, LANE))

    # Batch tile: bf16-aligned (16 rows).  Single grid step on 1-TC chips;
    # on v7x split two ways only when both halves are non-trivial (B >= 32).
    if batch_tile is not None:
        tb = _round_up(max(int(batch_tile), BF16_SUBLANE), BF16_SUBLANE)
    else:
        cap = 1024
        if _num_tensorcores() >= 2 and B >= 32:
            tb = _round_up(-(-B // 2), BF16_SUBLANE)  # equal per-TC tiles
        else:
            tb = _round_up(max(B, BF16_SUBLANE), BF16_SUBLANE)
        tb = min(tb, cap)
    Bp = _round_up(B, tb)

    # Prepare operands: bf16 matmul inputs, f32 biases, zero padding.
    x = jnp.pad(features.astype(compute_dtype), ((0, Bp - B), (0, Hp - H)))
    w1 = jnp.zeros((Hp, Hp), compute_dtype).at[:H, :H].set(
        w_dense.astype(compute_dtype))
    b1 = jnp.zeros((1, Hp), jnp.float32).at[:, :H].set(
        jnp.asarray(b_dense, jnp.float32).reshape(1, H))
    w2 = jnp.zeros((Hp, Lp), compute_dtype).at[:H, :L].set(
        w_out.astype(compute_dtype))
    b2 = jnp.zeros((1, Lp), jnp.float32).at[:, :L].set(
        jnp.asarray(b_out, jnp.float32).reshape(1, L))

    in_b = jnp.dtype(compute_dtype).itemsize
    out_b = jnp.dtype(out_dtype).itemsize

    # Explicit per-step VMEM budget (double-buffered streamed operands +
    # resident weights + f32/bf16 h temporaries), with 2x headroom.
    vmem_est = (2 * tb * Hp * in_b                      # x tile (double buffered)
                + 2 * tb * Lp * out_b                   # output tile
                + 2 * (Hp * Hp * in_b + Hp * 4)         # dense weight + bias
                + 2 * (Hp * Lp * in_b + Lp * 4)         # out_proj weight + bias
                + tb * Hp * (4 + in_b))                 # f32 h + bf16 h_act
    vmem_limit = int(min(64 << 20, max(32 << 20, 2 * vmem_est)))

    cost = pl.CostEstimate(
        flops=2 * Bp * Hp * (Hp + Lp),
        transcendentals=Bp * Hp,
        bytes_accessed=(Bp * Hp * in_b + Hp * Hp * in_b + Hp * Lp * in_b
                        + (Hp + Lp) * 4 + Bp * Lp * out_b),
    )

    grid_spec = pl.GridSpec(
        grid=(Bp // tb,),
        in_specs=[
            pl.BlockSpec((tb, Hp), lambda i: (i, 0)),   # features: streamed over batch
            pl.BlockSpec((Hp, Hp), lambda i: (0, 0)),   # dense weight (resident)
            pl.BlockSpec((1, Hp), lambda i: (0, 0)),    # dense bias
            pl.BlockSpec((Hp, Lp), lambda i: (0, 0)),   # out_proj weight (lane-padded)
            pl.BlockSpec((1, Lp), lambda i: (0, 0)),    # out_proj bias (lane-padded)
        ],
        out_specs=pl.BlockSpec((tb, Lp), lambda i: (i, 0)),
    )

    kernel = functools.partial(_head_kernel, tanh_in_bf16=tanh_in_bf16)
    out = pl.pallas_call(
        kernel,
        out_shape=jax.ShapeDtypeStruct((Bp, Lp), out_dtype),
        grid_spec=grid_spec,
        compiler_params=pltpu.CompilerParams(
            dimension_semantics=("parallel",),
            vmem_limit_bytes=vmem_limit),
        cost_estimate=cost,
    )(x, w1, b1, w2, b2)

    return out[:B, :L]


def _init_linear_params(key, in_features, out_features, dtype=jnp.float32):
    """PyTorch nn.Linear-style init; weight returned pre-transposed (in, out)."""
    kw, kb = jax.random.split(key)
    bound = 1.0 / (in_features ** 0.5)
    w = jax.random.uniform(kw, (in_features, out_features), dtype,
                           minval=-bound, maxval=bound)
    b = jax.random.uniform(kb, (1, out_features), dtype,
                           minval=-bound, maxval=bound)
    return w, b


if __name__ == "__main__":
    # Small config consistent with the module: hidden_size=32, num_labels=8.
    BATCH, HIDDEN, NUM_LABELS = 8, 32, 8

    key = jax.random.PRNGKey(0)
    k_feat, k_dense, k_out = jax.random.split(key, 3)

    features = jax.random.normal(k_feat, (BATCH, HIDDEN), jnp.float32)
    w_dense, b_dense = _init_linear_params(k_dense, HIDDEN, HIDDEN)
    w_out, b_out = _init_linear_params(k_out, HIDDEN, NUM_LABELS)

    logits = wav2vec2_classification_head(features, w_dense, b_dense, w_out, b_out)
    logits = jax.block_until_ready(logits)
    assert logits.shape == (BATCH, NUM_LABELS)

    # Reference matching kernel numerics (bf16 matmul inputs, f32 accumulation,
    # same tanh dtype path, bf16 h feeding the second matmul).
    tanh_bf16 = _has_bf16_eup()
    f32 = jnp.float32
    xe = features.astype(jnp.bfloat16).astype(f32)
    w1e = w_dense.astype(jnp.bfloat16).astype(f32)
    w2e = w_out.astype(jnp.bfloat16).astype(f32)
    h_ref = jnp.dot(xe, w1e, precision="highest") + b_dense
    if tanh_bf16:
        h_act_ref = jnp.tanh(h_ref.astype(jnp.bfloat16))
    else:
        h_act_ref = jnp.tanh(h_ref).astype(jnp.bfloat16)
    ref = jnp.dot(h_act_ref.astype(f32), w2e, precision="highest") + b_out
    assert jnp.allclose(logits, ref, atol=1e-2, rtol=1e-2), \
        float(jnp.max(jnp.abs(logits - ref)))

    # Looser sanity check against pure-f32 module math (bf16 cast error budget).
    ref_f32 = jnp.tanh(features @ w_dense + b_dense) @ w_out + b_out
    assert jnp.allclose(logits, ref_f32, atol=5e-2, rtol=5e-2)

    # TODO(synk): dropout (config.final_dropout) is defined but unused in the
    # PyTorch forward(), so it is intentionally not implemented.
    print("KERNEL_OK")
</pallas_src>

<mosaic_0001>
module attributes {stable_mosaic.version = 11 : i64} {
  func.func @_head_kernel(%arg0: i32, %arg1: memref<16x128xbf16, #tpu.memory_space<vmem>>, %arg2: memref<128x128xbf16, #tpu.memory_space<vmem>>, %arg3: memref<1x128xf32, #tpu.memory_space<vmem>>, %arg4: memref<128x128xbf16, #tpu.memory_space<vmem>>, %arg5: memref<1x128xf32, #tpu.memory_space<vmem>>, %arg6: memref<16x128xf32, #tpu.memory_space<vmem>>) attributes {dimension_semantics = [#tpu.dimension_semantics<parallel>], iteration_bounds = array<i64: 1>, scalar_prefetch = 0 : i64, scratch_operands = 0 : i64, tpu.core_type = #tpu.core_type<tc>, window_params = [{transform_indices = @transform_0, window_bounds = array<i64: 16, 128>}, {pipeline_mode = #tpu.pipeline_mode<synchronous>, transform_indices = @transform_1, window_bounds = array<i64: 128, 128>}, {pipeline_mode = #tpu.pipeline_mode<synchronous>, transform_indices = @transform_2, window_bounds = array<i64: 1, 128>}, {pipeline_mode = #tpu.pipeline_mode<synchronous>, transform_indices = @transform_3, window_bounds = array<i64: 128, 128>}, {pipeline_mode = #tpu.pipeline_mode<synchronous>, transform_indices = @transform_4, window_bounds = array<i64: 1, 128>}, {transform_indices = @transform_5, window_bounds = array<i64: 16, 128>}]} {
    %c0 = arith.constant 0 : index
    %c0_0 = arith.constant 0 : index
    %0 = vector.load %arg1[%c0, %c0_0] : memref<16x128xbf16, #tpu.memory_space<vmem>>, vector<16x128xbf16>
    %c0_1 = arith.constant 0 : index
    %c0_2 = arith.constant 0 : index
    %1 = vector.load %arg2[%c0_1, %c0_2] : memref<128x128xbf16, #tpu.memory_space<vmem>>, vector<128x128xbf16>
    %cst = arith.constant dense<0.000000e+00> : vector<16x128xf32>
    %2 = tpu.matmul %0, %1, %cst {dimension_numbers = #tpu.dot_dimension_numbers<[1], [0], [0], [1], [0, 0, 1, 1], [], []>} : vector<16x128xbf16>, vector<128x128xbf16>, vector<16x128xf32> -> vector<16x128xf32>
    %c0_3 = arith.constant 0 : index
    %c0_4 = arith.constant 0 : index
    %3 = vector.load %arg3[%c0_3, %c0_4] : memref<1x128xf32, #tpu.memory_space<vmem>>, vector<1x128xf32>
    %4 = vector.broadcast %3 : vector<1x128xf32> to vector<16x128xf32>
    %5 = arith.addf %2, %4 : vector<16x128xf32>
    %6 = arith.truncf %5 : vector<16x128xf32> to vector<16x128xbf16>
    %7 = math.tanh %6 : vector<16x128xbf16>
    %c0_5 = arith.constant 0 : index
    %c0_6 = arith.constant 0 : index
    %8 = vector.load %arg4[%c0_5, %c0_6] : memref<128x128xbf16, #tpu.memory_space<vmem>>, vector<128x128xbf16>
    %cst_7 = arith.constant dense<0.000000e+00> : vector<16x128xf32>
    %9 = tpu.matmul %7, %8, %cst_7 {dimension_numbers = #tpu.dot_dimension_numbers<[1], [0], [0], [1], [0, 0, 1, 1], [], []>} : vector<16x128xbf16>, vector<128x128xbf16>, vector<16x128xf32> -> vector<16x128xf32>
    %c0_8 = arith.constant 0 : index
    %c0_9 = arith.constant 0 : index
    %10 = vector.load %arg5[%c0_8, %c0_9] : memref<1x128xf32, #tpu.memory_space<vmem>>, vector<1x128xf32>
    %11 = vector.broadcast %10 : vector<1x128xf32> to vector<16x128xf32>
    %12 = arith.addf %9, %11 : vector<16x128xf32>
    %c0_10 = arith.constant 0 : index
    %c0_11 = arith.constant 0 : index
    %13 = vector.load %arg6[%c0_10, %c0_11] : memref<16x128xf32, #tpu.memory_space<vmem>>, vector<16x128xf32>
    tpu.vector_store %arg6[%c0_10, %c0_11], %12 {strides = array<i32>} : memref<16x128xf32, #tpu.memory_space<vmem>>, vector<16x128xf32>,
    return
  }
  func.func @transform_0(%arg0: i32) -> (i32, i32) {
    %c0_i32 = arith.constant 0 : i32
    %c0_i32_0 = arith.constant 0 : i32
    return %arg0, %c0_i32 : i32, i32
  }
  func.func @transform_1(%arg0: i32) -> (i32, i32) {
    %c0_i32 = arith.constant 0 : i32
    %c0_i32_0 = arith.constant 0 : i32
    %c0_i32_1 = arith.constant 0 : i32
    return %c0_i32, %c0_i32_0 : i32, i32
  }
  func.func @transform_2(%arg0: i32) -> (i32, i32) {
    %c0_i32 = arith.constant 0 : i32
    %c0_i32_0 = arith.constant 0 : i32
    %c0_i32_1 = arith.constant 0 : i32
    return %c0_i32, %c0_i32_0 : i32, i32
  }
  func.func @transform_3(%arg0: i32) -> (i32, i32) {
    %c0_i32 = arith.constant 0 : i32
    %c0_i32_0 = arith.constant 0 : i32
    %c0_i32_1 = arith.constant 0 : i32
    return %c0_i32, %c0_i32_0 : i32, i32
  }
  func.func @transform_4(%arg0: i32) -> (i32, i32) {
    %c0_i32 = arith.constant 0 : i32
    %c0_i32_0 = arith.constant 0 : i32
    %c0_i32_1 = arith.constant 0 : i32
    return %c0_i32, %c0_i32_0 : i32, i32
  }
  func.func @transform_5(%arg0: i32) -> (i32, i32) {
    %c0_i32 = arith.constant 0 : i32
    %c0_i32_0 = arith.constant 0 : i32
    return %arg0, %c0_i32 : i32, i32
  }
}

</mosaic_0001>

<llo_original>
// kernel: tpu_custom_call.1
$region0: #{tpu_custom_call.1}
  #allocation0 [shape = 'u32[]', space=smem, size = 0x4, offset = 0x4, fixed_abs, tag = 'smem constant byte address 0x4 - core index']
  #allocation1 [shape = 'u32[144,128]{1,0:T(1,128)}', space=vmem, size = 0x12000, scoped, tag = 'internal scratch']
  %s0 = inlined_call_operand.hbm [shape: bf16[16,128], index: 0, kind: input, shape index: {}]
  %s1 = inlined_call_operand.hbm [shape: bf16[128,128], index: 1, kind: input, shape index: {}]
  %s2 = inlined_call_operand.vmem [shape: f32[1,128], index: 2, kind: input, shape index: {}]
  %s3 = inlined_call_operand.hbm [shape: bf16[128,128], index: 3, kind: input, shape index: {}]
  %s4 = inlined_call_operand.vmem [shape: f32[1,128], index: 4, kind: input, shape index: {}]
  %s5 = inlined_call_operand.hbm [shape: f32[16,128], index: 5, kind: output, shape index: {}]
  %s6 = sld [smem:[#allocation0]]
  $region42: #{tpu_custom_call.1} parent=0
    _
  %s8 = ssub.s32 1, %s6
  %s9 = scalar_select 0, %s8, %s6
  $region1: #{tpu_custom_call.1} parent=0
    #allocation2 [shape = 'u8[4096]{0}', space=vmem, size = 0x1000, scoped, tag = 'input window, operand 0, single buffered']
    #allocation3 [shape = 's32[1]{0}', space=sflag, size = 0x4, scoped, tag = 'scoped memory for tpu_custom_call.1']
    #allocation4 [shape = 's32[1]{0}', space=sflag, size = 0x4, scoped, tag = 'scoped memory for tpu_custom_call.1']
    #allocation5 [shape = 'u8[32768]{0}', space=vmem, size = 0x8000, scoped, tag = 'input window, operand 1, single buffered']
    #allocation6 [shape = 's32[1]{0}', space=sflag, size = 0x4, scoped, tag = 'scoped memory for tpu_custom_call.1']
    #allocation7 [shape = 'u8[32768]{0}', space=vmem, size = 0x8000, scoped, tag = 'input window, operand 3, single buffered']
    #allocation8 [shape = 'u8[8192]{0}', space=vmem, size = 0x2000, scoped, tag = 'output window, operand 0, single buffered']
    %10 = vsyncpa [#allocation3], 0
    %11 = vsyncpa [#allocation6], 0
    %12 = vsyncpa [#allocation4], 0
    // Predicated region
    $region2: #{tpu_custom_call.1} parent=1 // pred_check
      _
    $region3: #{tpu_custom_call.1} parent=1 // pred_check_branch
      %14 = sbr.rel (0) target = $region5
    $region4: #{tpu_custom_call.1} parent=1 // pred_region
      %s16 = ssub.s32 128, 128
      %17 = vsyncadd [#allocation3], %s16
      %s18 = sshll.u32 [#allocation2], 4
      %s19 = int_to_ptr.vmem [resolvable:$true] %s18
      %24 = dma.hbm_to_vmem [thread:$0]  %s0, 128, %s19, [#allocation3], 64, 64, 4
    $region5: #{tpu_custom_call.1} parent=1 // pred_fallthru
      _
    // Predicated region
    $region6: #{tpu_custom_call.1} parent=1 // pred_check
      _
    $region7: #{tpu_custom_call.1} parent=1 // pred_check_branch
      %26 = sbr.rel (0) target = $region9
    $region8: #{tpu_custom_call.1} parent=1 // pred_region
      %s28 = ssub.s32 1024, 1024
      %29 = vsyncadd [#allocation6], %s28
      %s30 = sshll.u32 [#allocation5], 4
      %s31 = int_to_ptr.vmem [resolvable:$true] %s30
      %36 = dma.hbm_to_vmem [thread:$0]  %s1, 1024, %s31, [#allocation6], 64, 64, 4
    $region9: #{tpu_custom_call.1} parent=1 // pred_fallthru
      _
    // Predicated region
    $region10: #{tpu_custom_call.1} parent=1 // pred_check
      _
    $region11: #{tpu_custom_call.1} parent=1 // pred_check_branch
      %38 = sbr.rel (0) target = $region13
    $region12: #{tpu_custom_call.1} parent=1 // pred_region
      _
    $region13: #{tpu_custom_call.1} parent=1 // pred_fallthru
      _
    // Predicated region
    $region14: #{tpu_custom_call.1} parent=1 // pred_check
      _
    $region15: #{tpu_custom_call.1} parent=1 // pred_check_branch
      %40 = sbr.rel (0) target = $region17
    $region16: #{tpu_custom_call.1} parent=1 // pred_region
      %s42 = ssub.s32 1024, 1024
      %43 = vsyncadd [#allocation6], %s42
      %s44 = sshll.u32 [#allocation7], 4
      %s45 = int_to_ptr.vmem [resolvable:$true] %s44
      %50 = dma.hbm_to_vmem [thread:$0]  %s3, 1024, %s45, [#allocation6], 64, 64, 4
    $region17: #{tpu_custom_call.1} parent=1 // pred_fallthru
      _
    // Predicated region
    $region18: #{tpu_custom_call.1} parent=1 // pred_check
      _
    $region19: #{tpu_custom_call.1} parent=1 // pred_check_branch
      %52 = sbr.rel (0) target = $region21
    $region20: #{tpu_custom_call.1} parent=1 // pred_region
      _
    $region21: #{tpu_custom_call.1} parent=1 // pred_fallthru
      _
    // Predicated region
    $region22: #{tpu_custom_call.1} parent=1 // pred_check
      _
    $region23: #{tpu_custom_call.1} parent=1 // pred_check_branch
      %54 = sbr.rel (0) target = $region25
    $region24: #{tpu_custom_call.1} parent=1 // pred_region
      %55 = dma.done [#allocation3], 128
    $region25: #{tpu_custom_call.1} parent=1 // pred_fallthru
      _
    // Predicated region
    $region26: #{tpu_custom_call.1} parent=1 // pred_check
      _
    $region27: #{tpu_custom_call.1} parent=1 // pred_check_branch
      %57 = sbr.rel (0) target = $region29
    $region28: #{tpu_custom_call.1} parent=1 // pred_region
      %58 = dma.done [#allocation6], 1024
    $region29: #{tpu_custom_call.1} parent=1 // pred_fallthru
      _
    // Predicated region
    $region30: #{tpu_custom_call.1} parent=1 // pred_check
      _
    $region31: #{tpu_custom_call.1} parent=1 // pred_check_branch
      %60 = sbr.rel (0) target = $region33
    $region32: #{tpu_custom_call.1} parent=1 // pred_region
      %61 = dma.done [#allocation6], 1024
    $region33: #{tpu_custom_call.1} parent=1 // pred_fallthru
      _
    %v63 = vld [vmem:[#allocation2] sm:$0xf]
    %v64 = vld [vmem:[#allocation2 + $0x4] sm:$0xf]
    %v65 = vld [vmem:[#allocation5] sm:$0xf]
    %v66 = vld [vmem:[#allocation5 + $0x4] sm:$0xf]
    %v67 = vld [vmem:[#allocation5 + $0x8] sm:$0xf]
    %v68 = vld [vmem:[#allocation5 + $0xc] sm:$0xf]
    %v69 = vld [vmem:[#allocation5 + $0x10] sm:$0xf]
    %v70 = vld [vmem:[#allocation5 + $0x14] sm:$0xf]
    %v71 = vld [vmem:[#allocation5 + $0x18] sm:$0xf]
    %v72 = vld [vmem:[#allocation5 + $0x1c] sm:$0xf]
    %v73 = vld [vmem:[#allocation5 + $0x20] sm:$0xf]
    %v74 = vld [vmem:[#allocation5 + $0x24] sm:$0xf]
    %v75 = vld [vmem:[#allocation5 + $0x28] sm:$0xf]
    %v76 = vld [vmem:[#allocation5 + $0x2c] sm:$0xf]
    %v77 = vld [vmem:[#allocation5 + $0x30] sm:$0xf]
    %v78 = vld [vmem:[#allocation5 + $0x34] sm:$0xf]
    %v79 = vld [vmem:[#allocation5 + $0x38] sm:$0xf]
    %v80 = vld [vmem:[#allocation5 + $0x3c] sm:$0xf]
    %v81 = vld [vmem:[%s2] sm:$0x1]
    %v83 = vlaneseq
    %v84 = vshrl.u32 %v83, 7
    %v85 = vsub.s32 0, %v84
    %v86 = vrot.slane %v81, %v85
    %v90 = vunpack.c.l.b16 %v63
    %v91 = vunpack.c.l.b16 %v64
    %v92 = vpack.c.b16 %v91, %v90
    %v110 = vunpack.c.l.b16 %v65
    %v111 = vunpack.c.l.b16 %v66
    %v112 = vunpack.c.l.b16 %v67
    %v113 = vunpack.c.l.b16 %v68
    %v114 = vunpack.c.l.b16 %v69
    %v115 = vunpack.c.l.b16 %v70
    %v116 = vunpack.c.l.b16 %v71
    %v117 = vunpack.c.l.b16 %v72
    %v118 = vunpack.c.l.b16 %v73
    %v119 = vunpack.c.l.b16 %v74
    %v120 = vunpack.c.l.b16 %v75
    %v121 = vunpack.c.l.b16 %v76
    %v122 = vunpack.c.l.b16 %v77
    %v123 = vunpack.c.l.b16 %v78
    %v124 = vunpack.c.l.b16 %v79
    %v125 = vunpack.c.l.b16 %v80
    %v126 = vpack.c.b16 %v111, %v110
    %v127 = vpack.c.b16 %v113, %v112
    %v128 = vpack.c.b16 %v115, %v114
    %v129 = vpack.c.b16 %v117, %v116
    %v130 = vpack.c.b16 %v119, %v118
    %v131 = vpack.c.b16 %v121, %v120
    %v132 = vpack.c.b16 %v123, %v122
    %v133 = vpack.c.b16 %v125, %v124
    %142 = vmatprep.subr.bf16.mxu0 0
    %143 = vmatpush1.bf16.msra.mxu0 %v126
    %144 = vmatprep.subr.bf16.mxu0 0
    %145 = vmatpush1.bf16.msra.mxu0 %v127
    %146 = vmatprep.subr.bf16.mxu0 0
    %147 = vmatpush1.bf16.msra.mxu0 %v128
    %148 = vmatprep.subr.bf16.mxu0 0
    %149 = vmatpush1.bf16.msra.mxu0 %v129
    %150 = vmatprep.subr.bf16.mxu0 0
    %151 = vmatpush1.bf16.msra.mxu0 %v130
    %152 = vmatprep.subr.bf16.mxu0 0
    %153 = vmatpush1.bf16.msra.mxu0 %v131
    %154 = vmatprep.subr.bf16.mxu0 0
    %155 = vmatpush1.bf16.msra.mxu0 %v132
    %156 = vmatprep.subr.bf16.mxu0 0
    %157 = vmatpush1.bf16.msra.mxu0 %v133
    %158 = vmatprep.subr.bf16.mxu0 0
    %159 = vmatpush1.bf16.msra.mxu0 0
    %160 = vmatprep.subr.bf16.mxu0 0
    %161 = vmatpush1.bf16.msra.mxu0 0
    %162 = vmatprep.subr.bf16.mxu0 0
    %163 = vmatpush1.bf16.msra.mxu0 0
    %164 = vmatprep.subr.bf16.mxu0 0
    %165 = vmatpush1.bf16.msra.mxu0 0
    %166 = vmatprep.subr.bf16.mxu0 0
    %167 = vmatpush1.bf16.msra.mxu0 0
    %168 = vmatprep.subr.bf16.mxu0 0
    %169 = vmatpush1.bf16.msra.mxu0 0
    %170 = vmatprep.subr.bf16.mxu0 0
    %171 = vmatpush1.bf16.msra.mxu0 0
    %172 = vmatprep.subr.bf16.mxu0 0
    %173 = vmatpush1.bf16.msra.mxu0 0
    %174 = vmatprep.mubr.bf16.mxu0 0
    %175 = vmatmul.mubr.bf16.gmra.mrb[0].mxu0 %v92
    %v176 = vpop.f32.mrb[0].mxu0
    %v177 = vadd.f32 %v86, %v176
    %v178 = vpop.f32.mrb[0].mxu0
    %v179 = vpop.f32.mrb[0].mxu0
    %v180 = vadd.f32 %v86, %v179
    %v181 = vpop.f32.mrb[0].mxu0
    %182 = vdwg.mxu0
    %v183 = vpack.c.bf16 %v180, %v177
    %v184 = vtanh.bf16.pop %v183
    %v185 = vld [vmem:[#allocation7] sm:$0xf]
    %v186 = vld [vmem:[#allocation7 + $0x4] sm:$0xf]
    %v187 = vld [vmem:[#allocation7 + $0x8] sm:$0xf]
    %v188 = vld [vmem:[#allocation7 + $0xc] sm:$0xf]
    %v189 = vld [vmem:[#allocation7 + $0x10] sm:$0xf]
    %v190 = vld [vmem:[#allocation7 + $0x14] sm:$0xf]
    %v191 = vld [vmem:[#allocation7 + $0x18] sm:$0xf]
    %v192 = vld [vmem:[#allocation7 + $0x1c] sm:$0xf]
    %v193 = vld [vmem:[#allocation7 + $0x20] sm:$0xf]
    %v194 = vld [vmem:[#allocation7 + $0x24] sm:$0xf]
    %v195 = vld [vmem:[#allocation7 + $0x28] sm:$0xf]
    %v196 = vld [vmem:[#allocation7 + $0x2c] sm:$0xf]
    %v197 = vld [vmem:[#allocation7 + $0x30] sm:$0xf]
    %v198 = vld [vmem:[#allocation7 + $0x34] sm:$0xf]
    %v199 = vld [vmem:[#allocation7 + $0x38] sm:$0xf]
    %v200 = vld [vmem:[#allocation7 + $0x3c] sm:$0xf]
    %v201 = vld [vmem:[%s4] sm:$0x1]
    %v203 = vlaneseq
    %v204 = vshrl.u32 %v203, 7
    %v205 = vsub.s32 0, %v204
    %v206 = vrot.slane %v201, %v205
    %v224 = vunpack.c.l.b16 %v185
    %v225 = vunpack.c.l.b16 %v186
    %v226 = vunpack.c.l.b16 %v187
    %v227 = vunpack.c.l.b16 %v188
    %v228 = vunpack.c.l.b16 %v189
    %v229 = vunpack.c.l.b16 %v190
    %v230 = vunpack.c.l.b16 %v191
    %v231 = vunpack.c.l.b16 %v192
    %v232 = vunpack.c.l.b16 %v193
    %v233 = vunpack.c.l.b16 %v194
    %v234 = vunpack.c.l.b16 %v195
    %v235 = vunpack.c.l.b16 %v196
    %v236 = vunpack.c.l.b16 %v197
    %v237 = vunpack.c.l.b16 %v198
    %v238 = vunpack.c.l.b16 %v199
    %v239 = vunpack.c.l.b16 %v200
    %v240 = vpack.c.b16 %v225, %v224
    %v241 = vpack.c.b16 %v227, %v226
    %v242 = vpack.c.b16 %v229, %v228
    %v243 = vpack.c.b16 %v231, %v230
    %v244 = vpack.c.b16 %v233, %v232
    %v245 = vpack.c.b16 %v235, %v234
    %v246 = vpack.c.b16 %v237, %v236
    %v247 = vpack.c.b16 %v239, %v238
    %256 = vmatprep.subr.bf16.mxu0 0
    %257 = vmatpush1.bf16.msra.mxu0 %v240
    %258 = vmatprep.subr.bf16.mxu0 0
    %259 = vmatpush1.bf16.msra.mxu0 %v241
    %260 = vmatprep.subr.bf16.mxu0 0
    %261 = vmatpush1.bf16.msra.mxu0 %v242
    %262 = vmatprep.subr.bf16.mxu0 0
    %263 = vmatpush1.bf16.msra.mxu0 %v243
    %264 = vmatprep.subr.bf16.mxu0 0
    %265 = vmatpush1.bf16.msra.mxu0 %v244
    %266 = vmatprep.subr.bf16.mxu0 0
    %267 = vmatpush1.bf16.msra.mxu0 %v245
    %268 = vmatprep.subr.bf16.mxu0 0
    %269 = vmatpush1.bf16.msra.mxu0 %v246
    %270 = vmatprep.subr.bf16.mxu0 0
    %271 = vmatpush1.bf16.msra.mxu0 %v247
    %272 = vmatprep.subr.bf16.mxu0 0
    %273 = vmatpush1.bf16.msra.mxu0 0
    %274 = vmatprep.subr.bf16.mxu0 0
    %275 = vmatpush1.bf16.msra.mxu0 0
    %276 = vmatprep.subr.bf16.mxu0 0
    %277 = vmatpush1.bf16.msra.mxu0 0
    %278 = vmatprep.subr.bf16.mxu0 0
    %279 = vmatpush1.bf16.msra.mxu0 0
    %280 = vmatprep.subr.bf16.mxu0 0
    %281 = vmatpush1.bf16.msra.mxu0 0
    %282 = vmatprep.subr.bf16.mxu0 0
    %283 = vmatpush1.bf16.msra.mxu0 0
    %284 = vmatprep.subr.bf16.mxu0 0
    %285 = vmatpush1.bf16.msra.mxu0 0
    %286 = vmatprep.subr.bf16.mxu0 0
    %287 = vmatpush1.bf16.msra.mxu0 0
    %288 = vmatprep.mubr.bf16.mxu0 0
    %289 = vmatmul.mubr.bf16.gmra.mrb[0].mxu0 %v184
    %v290 = vpop.f32.mrb[0].mxu0
    %v291 = vadd.f32 %v206, %v290
    %v292 = vpop.f32.mrb[0].mxu0
    %v293 = vpop.f32.mrb[0].mxu0
    %v294 = vadd.f32 %v206, %v293
    %v295 = vpop.f32.mrb[0].mxu0
    %296 = vdwg.mxu0
    %297 = vst [vmem:[#allocation8] sm:$0xff] %v291
    %298 = vst [vmem:[#allocation8 + $0x8] sm:$0xff] %v294
    // Predicated region
    $region34: #{tpu_custom_call.1} parent=1 // pred_check
      _
    $region35: #{tpu_custom_call.1} parent=1 // pred_check_branch
      %300 = sbr.rel (0) target = $region37
    $region36: #{tpu_custom_call.1} parent=1 // pred_region
      %s302 = ssub.s32 256, 256
      %303 = vsyncadd [#allocation4], %s302
      %s304 = sshll.u32 [#allocation8], 4
      %s305 = int_to_ptr.vmem [resolvable:$true] %s304
      %310 = dma.vmem_to_hbm [thread:$0]  %s305, 256, %s5, [#allocation4], 128, 128, 8
    $region37: #{tpu_custom_call.1} parent=1 // pred_fallthru
      _
    // Predicated region
    $region38: #{tpu_custom_call.1} parent=1 // pred_check
      _
    $region39: #{tpu_custom_call.1} parent=1 // pred_check_branch
      %312 = sbr.rel (0) target = $region41
    $region40: #{tpu_custom_call.1} parent=1 // pred_region
      %313 = dma.done [#allocation4], 256
    $region41: #{tpu_custom_call.1} parent=1 // pred_fallthru
      _
    %314 = vsyncpa [#allocation3], 1
    %315 = vsyncpa [#allocation6], 1
    %316 = vsyncpa [#allocation4], 1

</llo_original>
